<compile_context>
chip_gen: v7x
topology: tpu7x:2x2x1
jax: 0.10.0
libtpu: 0.0.40
codegen_flags: <defaults>
</compile_context>

<pallas_src>
import jax
import jax.numpy as jnp
from jax.experimental import pallas as pl
from jax.experimental.pallas import tpu as pltpu


def _soft_linear_unit_kernel(x_ref, o_ref):
    # Boundary (partial) blocks may compute on out-of-bounds/garbage rows
    # before the masked writeback -- fine for this pure elementwise math on
    # TPU (no FP traps).  Do NOT add any cross-row reduction here.
    x = x_ref[...]
    t = 0.1 * x
    o_ref[...] = jnp.minimum(jnp.maximum(t, x), t + 0.9).astype(o_ref.dtype)


def _chip_tuning():
    """(target_block_bytes, vmem_limit_bytes) per TPU generation.

    Distinguish v7x (64 MiB per-TC VMEM) from v5e/v6e (128 MiB) via the
    reported VMEM capacity; falls back to conservative v5e/v6e defaults if
    the query is unavailable (e.g. interpret mode).
    """
    vmem_cap = 128 * 1024 * 1024
    try:
        info = pltpu.get_tpu_info()
        vmem_cap = int(getattr(info, "vmem_capacity_bytes", vmem_cap))
    except Exception:
        pass
    if vmem_cap <= 64 * 1024 * 1024:
        # v7x-class: big blocks amortize the fixed per-step overhead at
        # 3.2 TB/s; 48 MiB scoped limit leaves 16 MiB headroom under the
        # 64 MiB physical VMEM.
        return 8 * 1024 * 1024, 48 * 1024 * 1024
    # v5e / v6e: 2-4 MiB blocks are already on the ~85% roofline plateau.
    return 4 * 1024 * 1024, 64 * 1024 * 1024


def soft_linear_unit(x: jax.Array, *, in_place: bool = True) -> jax.Array:
    """Applies min(max(0.1*x, x), 0.1*x + 0.9) elementwise via a Pallas kernel.

    For peak efficiency on large activation maps, donate `x` at the jit
    boundary (jax.jit(..., donate_argnums=...)) so input_output_aliases can
    reuse the input buffer in place.
    """
    orig_shape = x.shape
    total = x.size
    if total == 0:
        return x

    # torch promotes 0.1 * int_tensor to float; mirror that (and avoid the
    # 0.1*x -> 0 truncation bug) by computing integer/bool inputs in f32.
    if not jnp.issubdtype(x.dtype, jnp.floating):
        x = x.astype(jnp.float32)
    dtype = x.dtype
    itemsize = x.dtype.itemsize
    sublane = {4: 8, 2: 16, 1: 32}.get(itemsize, 8)  # native packing rows/vreg

    # Element count not 128-aligned: padding/slicing would add extra full-array
    # HBM passes that cost more than the kernel itself.  Plain XLA fusion is
    # already at the HBM roofline for this memory-bound elementwise op.
    if total % 128 != 0:
        t = 0.1 * x
        return jnp.reshape(jnp.minimum(jnp.maximum(t, x), t + 0.9), orig_shape)

    # Pick the widest lane dimension (multiple of 128) that divides the element
    # count, so the reshape is a free bitcast (no copy), stores are lane-dense
    # unmasked vst, and DMA descriptors are large and contiguous.
    lanes = 128
    for cand in (4096, 2048, 1024, 512, 256):
        if total % cand == 0:
            lanes = cand
            break
    rows = total // lanes
    x2d = jnp.reshape(x, (rows, lanes))  # contiguous reshape: free bitcast

    target_block_bytes, vmem_limit_bytes = _chip_tuning()

    # Row tile targeting ~target_block_bytes per buffer, rounded to the
    # dtype-native sublane packing.  Small inputs become a single full block.
    if rows <= sublane:
        tr = rows  # block dim equals full array dim -> always legal
    else:
        tr = max(target_block_bytes // (lanes * itemsize), sublane)
        tr = (tr // sublane) * sublane
        tr = min(tr, (rows // sublane) * sublane)
        # Keep >= ~4 grid steps when the tensor is big enough so the
        # double-buffered pipeline still has work in flight.
        min_steps = 4
        if rows >= min_steps * sublane:
            cap = max(((rows // min_steps) // sublane) * sublane, sublane)
            tr = min(tr, cap)

    # Boundary block (if any) is masked by Pallas on writeback; out-of-bounds
    # rows are never written to HBM, so no padding copy is needed.
    grid = (pl.cdiv(rows, tr),)

    out2d = pl.pallas_call(
        _soft_linear_unit_kernel,
        out_shape=jax.ShapeDtypeStruct((rows, lanes), dtype),
        grid_spec=pltpu.PrefetchScalarGridSpec(
            num_scalar_prefetch=0,
            grid=grid,
            in_specs=[pl.BlockSpec((tr, lanes), lambda i: (i, 0))],
            out_specs=pl.BlockSpec((tr, lanes), lambda i: (i, 0)),
        ),
        # Elementwise same-block read-then-write: safe to alias input/output.
        input_output_aliases={0: 0} if in_place else {},
        compiler_params=pltpu.CompilerParams(
            # 'parallel' lets v7x shard steps over its 2 cores (no bandwidth
            # gain -- shared HBM pipe -- but harmless and cheap).
            dimension_semantics=("parallel",),
            vmem_limit_bytes=vmem_limit_bytes,
        ),
    )(x2d)

    return jnp.reshape(out2d, orig_shape)  # contiguous reshape: free bitcast


if __name__ == "__main__":
    key = jax.random.PRNGKey(0)

    def ref(v):
        return jnp.minimum(jnp.maximum(0.1 * v, v), 0.1 * v + 0.9)

    # NCHW input, same convention as the PyTorch module's typical usage.
    x = jax.random.normal(key, (2, 4, 16, 16), dtype=jnp.float32) * 3.0
    y = soft_linear_unit(x)
    jax.block_until_ready(y)
    assert y.shape == x.shape and y.dtype == x.dtype
    assert jnp.allclose(y, ref(x), atol=1e-6, rtol=1e-6)

    # Larger 128-aligned input: exercises the multi-step grid path.
    x_big = jax.random.normal(jax.random.PRNGKey(1), (8, 8, 128, 32), jnp.float32)
    y_big = soft_linear_unit(x_big)
    jax.block_until_ready(y_big)
    assert jnp.allclose(y_big, ref(x_big), atol=1e-6, rtol=1e-6)

    # Non-128-aligned element count: exercises the XLA-fusion fallback.
    x_odd = jax.random.normal(jax.random.PRNGKey(2), (3, 5, 7), jnp.float32)
    y_odd = soft_linear_unit(x_odd)
    jax.block_until_ready(y_odd)
    assert jnp.allclose(y_odd, ref(x_odd), atol=1e-6, rtol=1e-6)

    print("KERNEL_OK")
</pallas_src>

<mosaic_0001>
module attributes {stable_mosaic.version = 11 : i64} {
  func.func @_soft_linear_unit_kernel(%arg0: i32, %arg1: memref<1x2048xf32, #tpu.memory_space<vmem>>, %arg2: memref<1x2048xf32, #tpu.memory_space<vmem>>) attributes {dimension_semantics = [#tpu.dimension_semantics<parallel>], iteration_bounds = array<i64: 1>, scalar_prefetch = 0 : i64, scratch_operands = 0 : i64, tpu.core_type = #tpu.core_type<tc>, window_params = [{transform_indices = @transform_0, window_bounds = array<i64: 1, 2048>}, {transform_indices = @transform_1, window_bounds = array<i64: 1, 2048>}]} {
    %c0 = arith.constant 0 : index
    %c0_0 = arith.constant 0 : index
    %0 = vector.load %arg1[%c0, %c0_0] : memref<1x2048xf32, #tpu.memory_space<vmem>>, vector<1x2048xf32>
    %cst = arith.constant 1.000000e-01 : f32
    %1 = vector.broadcast %cst : f32 to vector<1x2048xf32>
    %2 = arith.mulf %1, %0 : vector<1x2048xf32>
    %3 = arith.maximumf %2, %0 : vector<1x2048xf32>
    %cst_1 = arith.constant 0.899999976 : f32
    %4 = vector.broadcast %cst_1 : f32 to vector<1x2048xf32>
    %5 = arith.addf %2, %4 : vector<1x2048xf32>
    %6 = arith.minimumf %3, %5 : vector<1x2048xf32>
    %c0_2 = arith.constant 0 : index
    %c0_3 = arith.constant 0 : index
    %7 = vector.load %arg2[%c0_2, %c0_3] : memref<1x2048xf32, #tpu.memory_space<vmem>>, vector<1x2048xf32>
    tpu.vector_store %arg2[%c0_2, %c0_3], %6 {strides = array<i32>} : memref<1x2048xf32, #tpu.memory_space<vmem>>, vector<1x2048xf32>,
    return
  }
  func.func @transform_0(%arg0: i32) -> (i32, i32) {
    %c0_i32 = arith.constant 0 : i32
    %c0_i32_0 = arith.constant 0 : i32
    return %arg0, %c0_i32 : i32, i32
  }
  func.func @transform_1(%arg0: i32) -> (i32, i32) {
    %c0_i32 = arith.constant 0 : i32
    %c0_i32_0 = arith.constant 0 : i32
    return %arg0, %c0_i32 : i32, i32
  }
}

</mosaic_0001>

<llo_original>
// kernel: tpu_custom_call.1
$region0: #{tpu_custom_call.1}
  #allocation0 [shape = 'u32[]', space=smem, size = 0x4, offset = 0x4, fixed_abs, tag = 'smem constant byte address 0x4 - core index']
  #allocation1 [shape = 'u32[144,128]{1,0:T(1,128)}', space=vmem, size = 0x12000, scoped, tag = 'internal scratch']
  %s0 = inlined_call_operand.hbm [shape: f32[1,2048], index: 0, kind: input, shape index: {}, may-alias: {0,1}]
  %s1 = inlined_call_operand.hbm [shape: f32[1,2048], index: 1, kind: output, shape index: {}, may-alias: {0,1}]
  %s2 = sld [smem:[#allocation0]]
  $region18: #{tpu_custom_call.1} parent=0
    _
  %s4 = ssub.s32 1, %s2
  %s5 = scalar_select 0, %s4, %s2
  $region1: #{tpu_custom_call.1} parent=0
    #allocation2 [shape = 'u8[8192]{0}', space=vmem, size = 0x2000, scoped, tag = 'input window, operand 0, single buffered']
    #allocation3 [shape = 's32[1]{0}', space=sflag, size = 0x4, scoped, tag = 'scoped memory for tpu_custom_call.1']
    #allocation4 [shape = 's32[1]{0}', space=sflag, size = 0x4, scoped, tag = 'scoped memory for tpu_custom_call.1']
    #allocation5 [shape = 'u8[8192]{0}', space=vmem, size = 0x2000, scoped, tag = 'output window, operand 0, single buffered']
    %6 = vsyncpa [#allocation3], 0
    %7 = vsyncpa [#allocation4], 0
    // Predicated region
    $region2: #{tpu_custom_call.1} parent=1 // pred_check
      _
    $region3: #{tpu_custom_call.1} parent=1 // pred_check_branch
      %9 = sbr.rel (0) target = $region5
    $region4: #{tpu_custom_call.1} parent=1 // pred_region
      %s11 = ssub.s32 256, 256
      %12 = vsyncadd [#allocation3], %s11
      %s14 = sshll.u32 [#allocation2], 4
      %s15 = int_to_ptr.vmem [resolvable:$true] %s14
      %17 = dma.hbm_to_vmem [thread:$0]  %s0, 256, %s15, [#allocation3]
    $region5: #{tpu_custom_call.1} parent=1 // pred_fallthru
      _
    // Predicated region
    $region6: #{tpu_custom_call.1} parent=1 // pred_check
      _
    $region7: #{tpu_custom_call.1} parent=1 // pred_check_branch
      %19 = sbr.rel (0) target = $region9
    $region8: #{tpu_custom_call.1} parent=1 // pred_region
      %20 = dma.done [#allocation3], 256
    $region9: #{tpu_custom_call.1} parent=1 // pred_fallthru
      _
    %v21 = vld [vmem:[#allocation2] sm:$0xff]
    %v22 = vld [vmem:[#allocation2 + $0x8] sm:$0xff]
    %v23 = vmul.f32 %v21, 0.1
    %v24 = vmul.f32 %v22, 0.1
    %v25 = vmax.f32 %v23, %v21
    %v26 = vmax.f32 %v24, %v22
    %v27 = vadd.f32 %v23, 0.9
    %v28 = vadd.f32 %v24, 0.9
    %v29 = vmin.f32 %v25, %v27
    %v30 = vmin.f32 %v26, %v28
    %31 = vst [vmem:[#allocation5] sm:$0xff] %v29
    %32 = vst [vmem:[#allocation5 + $0x8] sm:$0xff] %v30
    // Predicated region
    $region10: #{tpu_custom_call.1} parent=1 // pred_check
      _
    $region11: #{tpu_custom_call.1} parent=1 // pred_check_branch
      %34 = sbr.rel (0) target = $region13
    $region12: #{tpu_custom_call.1} parent=1 // pred_region
      %s36 = ssub.s32 256, 256
      %37 = vsyncadd [#allocation4], %s36
      %s39 = sshll.u32 [#allocation5], 4
      %s40 = int_to_ptr.vmem [resolvable:$true] %s39
      %42 = dma.vmem_to_hbm [thread:$0]  %s40, 256, %s1, [#allocation4]
    $region13: #{tpu_custom_call.1} parent=1 // pred_fallthru
      _
    // Predicated region
    $region14: #{tpu_custom_call.1} parent=1 // pred_check
      _
    $region15: #{tpu_custom_call.1} parent=1 // pred_check_branch
      %44 = sbr.rel (0) target = $region17
    $region16: #{tpu_custom_call.1} parent=1 // pred_region
      %45 = dma.done [#allocation4], 256
    $region17: #{tpu_custom_call.1} parent=1 // pred_fallthru
      _
    %46 = vsyncpa [#allocation3], 1
    %47 = vsyncpa [#allocation4], 1

</llo_original>
